<compile_context>
chip_gen: v7x
topology: tpu7x:2x2x1
jax: 0.10.0
libtpu: 0.0.40
codegen_flags: <defaults>
</compile_context>

<pallas_src>
import functools

import numpy as np
import jax
import jax.numpy as jnp
from jax import lax
from jax.experimental import pallas as pl
from jax.experimental.pallas import tpu as pltpu


def _round_up(x, m):
    return (x + m - 1) // m * m


def _rpl_tile_kernel(feat_ref, p_ref, pn2_ref, target_ref, part_ref, *,
                     gamma, smoothing, num_classes, num_rp_per_cls):
    C = num_classes
    RP = num_rp_per_cls

    feat = feat_ref[...]                      # (TB, D)  native dtype (bf16/f32)
    p = p_ref[...]                            # (Mp, D)  native dtype (zero-padded rows)
    pn2 = pn2_ref[...]                        # (1, Mp)  f32, padded entries are 0
    tgt = target_ref[...]                     # (TB, 1)  int32, 0 = unknown / batch pad

    TB = feat.shape[0]
    Mp = p.shape[0]
    Cp = part_ref.shape[-1]

    # squared euclidean distances: d2[b, m] = ||f_b||^2 + ||P_m||^2 - 2 <f_b, P_m>
    gram = lax.dot_general(feat, p, (((1,), (1,)), ((), ())),
                           preferred_element_type=jnp.float32)           # (TB, Mp) MXU
    feat32 = feat.astype(jnp.float32)
    fn2 = jnp.sum(feat32 * feat32, axis=1, keepdims=True)                # (TB, 1)
    d2 = jnp.maximum(fn2 + pn2 - 2.0 * gram, 0.0)                        # (TB, Mp)

    # class-grouping matrix G[m, c] = 1 iff c*RP <= m < (c+1)*RP (built in-kernel, no
    # host gsum; padded P rows only fall into padded classes, which are masked out)
    m_ids = lax.broadcasted_iota(jnp.int32, (Mp, Cp), 0)
    c_lo = lax.broadcasted_iota(jnp.int32, (Mp, Cp), 1) * RP
    g = jnp.logical_and(m_ids >= c_lo, m_ids < c_lo + RP).astype(jnp.float32)

    s1 = jnp.dot(d2, g, preferred_element_type=jnp.float32)              # (TB, Cp) sum_r d2
    s2 = jnp.dot(d2 * d2, g, preferred_element_type=jnp.float32)         # (TB, Cp) sum_r d2^2

    # label-smoothed NLL over known samples; softmax over the C real classes only
    col_ids = lax.broadcasted_iota(jnp.int32, (TB, Cp), 1)
    valid_c = (col_ids < C).astype(jnp.float32)                          # (TB, Cp)
    logits = jnp.where(col_ids < C, (gamma / RP) * s1, jnp.float32(-1e30))
    mx = jnp.max(logits, axis=1, keepdims=True)
    lse = mx + jnp.log(jnp.sum(jnp.exp(logits - mx), axis=1, keepdims=True))
    logprobs = logits - lse                                              # (TB, Cp)

    maskf = (tgt != 0).astype(jnp.float32)                               # (TB, 1)
    kt = tgt - 1                                                         # -1 for unknown/pad
    onehot = (col_ids == kt).astype(jnp.float32)                         # (TB, Cp)

    nll = -jnp.sum(logprobs * onehot, axis=1, keepdims=True)             # (TB, 1)
    smooth = -jnp.sum(logprobs * valid_c, axis=1, keepdims=True) * (1.0 / C)
    per_sample = (1.0 - smoothing) * nll + smoothing * smooth            # (TB, 1)

    # per-tile partial sums (reduced across tiles by a tiny XLA epilogue)
    a1 = jnp.sum(s1 * maskf, axis=0, keepdims=True)                      # (1, Cp)
    a2 = jnp.sum(s2 * maskf, axis=0, keepdims=True)                      # (1, Cp)
    cnt = jnp.sum(onehot, axis=0, keepdims=True)                         # (1, Cp)
    lcc = jnp.sum(per_sample * onehot, axis=0, keepdims=True)            # (1, Cp)

    row_id = lax.broadcasted_iota(jnp.int32, (8, Cp), 0)
    part_ref[...] = (jnp.where(row_id == 0, a1, 0.0)
                     + jnp.where(row_id == 1, a2, 0.0)
                     + jnp.where(row_id == 2, cnt, 0.0)
                     + jnp.where(row_id == 3, lcc, 0.0))                 # lane-dense (8, Cp)


def rpl_loss(feat, P, R, target, *, num_classes, num_rp_per_cls,
             gamma=0.5, lambda_o=0.1, smoothing=0.1, block_b=128):
    """Returns (loss, L_c, L_o); matches RplLoss.forward (incl. the broadcasted
    cross-pair gather in L_o).  target: 0 = unknown, 1..C = known class."""
    B, D = feat.shape
    C, RP = num_classes, num_rp_per_cls
    M = C * RP
    assert P.shape == (M, D) and R.shape == (C,)

    Mp = _round_up(M, 128)
    Cp = _round_up(C, 128)
    TB = _round_up(min(block_b, _round_up(B, 8)), 8)
    Bp = _round_up(B, TB)
    T = Bp // TB

    # pad reciprocal points to a lane-aligned M (zero rows -> only padded classes see them)
    p = P.astype(feat.dtype)
    if Mp > M:
        p = jnp.pad(p, ((0, Mp - M), (0, 0)))
    # per-point squared norms, computed once (no B*M*D matmul), exact zeros for padding
    pn2 = jnp.sum(jnp.square(p.astype(jnp.float32)), axis=1).reshape(1, Mp)

    x = feat
    tgt = target.reshape(B, 1).astype(jnp.int32)
    if Bp > B:
        x = jnp.pad(x, ((0, Bp - B), (0, 0)))
        tgt = jnp.pad(tgt, ((0, Bp - B), (0, 0)))     # padded rows -> target 0 (masked out)

    kernel = functools.partial(_rpl_tile_kernel, gamma=float(gamma),
                               smoothing=float(smoothing),
                               num_classes=C, num_rp_per_cls=RP)

    parts = pl.pallas_call(
        kernel,
        out_shape=jax.ShapeDtypeStruct((T, 8, Cp), jnp.float32),
        grid=(T,),
        in_specs=[
            pl.BlockSpec((TB, D), lambda i: (i, 0)),      # feat tile (double-buffered)
            pl.BlockSpec((Mp, D), lambda i: (0, 0)),      # P (constant block, fetched once)
            pl.BlockSpec((1, Mp), lambda i: (0, 0)),      # per-point squared norms
            pl.BlockSpec((TB, 1), lambda i: (i, 0)),      # targets
        ],
        out_specs=pl.BlockSpec((None, 8, Cp), lambda i: (i, 0, 0)),
        compiler_params=pltpu.CompilerParams(
            dimension_semantics=("parallel",),            # lets v7x shard tiles over 2 TCs
            vmem_limit_bytes=32 * 1024 * 1024),
    )(x, p, pn2, tgt)

    # tiny epilogue: reduce per-tile partials + closed-form cross-pair L_o
    sums = jnp.sum(parts, axis=0)                         # (8, Cp)
    a1, a2, cnt, lcc = sums[0], sums[1], sums[2], sums[3]
    n = jnp.sum(cnt)                                      # number of known samples
    n_safe = jnp.maximum(n, 1.0)
    l_c = jnp.sum(lcc) / n_safe

    r = jnp.pad(R.astype(jnp.float32), (0, Cp - C))
    term = a2 - 2.0 * r * a1 + n * float(RP) * r * r
    l_o = jnp.sum(cnt * term) / (n_safe * n_safe * float(RP))

    has_known = n > 0.0
    l_c = jnp.where(has_known, l_c, jnp.float32(0.0))
    l_o = jnp.where(has_known, l_o, jnp.float32(0.0))
    loss = l_c + lambda_o * l_o
    return loss, l_c, l_o


def rpl_loss_reference(feat, P, R, target, num_classes, num_rp_per_cls,
                       gamma=0.5, lambda_o=0.1, smoothing=0.1):
    """Pure numpy mirror of the PyTorch forward (incl. its broadcasted gather)."""
    feat = np.asarray(feat, np.float64)
    P = np.asarray(P, np.float64)
    R = np.asarray(R, np.float64)
    target = np.asarray(target)
    B = feat.shape[0]
    confidence = 1.0 - smoothing

    diff = feat[:, None, :] - P[None, :, :]
    d2 = (diff ** 2).sum(-1)                                   # cdist(...).square()
    dist_to_rp = d2.reshape(B, num_classes, num_rp_per_cls)

    if not (target == 0).all():
        logits = gamma * dist_to_rp.mean(axis=2)
        mx = logits.max(axis=1, keepdims=True)
        logprobs_all = logits - (mx + np.log(np.exp(logits - mx).sum(axis=1, keepdims=True)))
        known = target != 0
        logprobs = logprobs_all[known]
        known_target = target[known][:, None] - 1              # (N, 1)
        nll = -np.take_along_axis(logprobs, known_target, axis=-1)[:, 0]
        smooth = -logprobs.mean(axis=-1)
        L_c = (confidence * nll + smoothing * smooth).mean()
        kd = dist_to_rp[known]                                  # (N, C, RP)
        gathered = kd[np.arange(kd.shape[0]), known_target, :]  # broadcast -> (N, N, RP)
        open_dist = (gathered - R[known_target][:, :, None]) ** 2
        L_o = open_dist.mean()
    else:
        L_c = 0.0
        L_o = 0.0
    return L_c + lambda_o * L_o, L_c, L_o


if __name__ == "__main__":
    B, D, C, RP = 8, 32, 4, 4  # batch, feature dim, num_classes, num_rp_per_cls

    key = jax.random.PRNGKey(0)
    kf, kp, kr, kt2, kf2 = jax.random.split(key, 5)
    feat = jax.random.normal(kf, (B, D), dtype=jnp.float32)
    P = 0.5 * jax.random.normal(kp, (C * RP, D), dtype=jnp.float32)      # model.P
    R = jnp.abs(jax.random.normal(kr, (C,), dtype=jnp.float32)) + 1.0    # model.R
    target = jnp.array([0, 1, 2, 3, 4, 2, 0, 3], dtype=jnp.int32)        # 0 = unknown

    fn = jax.jit(functools.partial(rpl_loss, num_classes=C, num_rp_per_cls=RP))

    out = fn(feat, P, R, target)
    jax.block_until_ready(out)
    ref = rpl_loss_reference(feat, P, R, target, C, RP)
    np.testing.assert_allclose(np.array([float(v) for v in out]),
                               np.array(ref, np.float64), rtol=2e-3, atol=1e-3)

    # multi-tile + batch-padding path: B=20 with TB=8 -> 3 tiles, 4 masked pad rows
    B2 = 20
    feat2 = jax.random.normal(kf2, (B2, D), dtype=jnp.float32)
    target2 = jax.random.randint(kt2, (B2,), 0, C + 1, dtype=jnp.int32)
    fn_tiled = jax.jit(functools.partial(rpl_loss, num_classes=C,
                                         num_rp_per_cls=RP, block_b=8))
    out2 = fn_tiled(feat2, P, R, target2)
    jax.block_until_ready(out2)
    ref2 = rpl_loss_reference(feat2, P, R, target2, C, RP)
    np.testing.assert_allclose(np.array([float(v) for v in out2]),
                               np.array(ref2, np.float64), rtol=2e-3, atol=1e-3)

    # all-unknown branch -> exact zeros
    out3 = fn(feat, P, R, jnp.zeros((B,), jnp.int32))
    jax.block_until_ready(out3)
    np.testing.assert_allclose(np.array([float(v) for v in out3]),
                               np.zeros(3), atol=1e-6)

    # bf16 fast path: native-dtype operands feed the MXU directly; check it runs
    out_bf16 = fn(feat.astype(jnp.bfloat16), P.astype(jnp.bfloat16), R, target)
    jax.block_until_ready(out_bf16)
    assert all(np.isfinite(float(v)) for v in out_bf16)

    print("KERNEL_OK")
</pallas_src>

<mosaic_0001>
module attributes {stable_mosaic.version = 11 : i64} {
  func.func @_rpl_tile_kernel(%arg0: i32, %arg1: memref<8x32xf32, #tpu.memory_space<vmem>>, %arg2: memref<128x32xf32, #tpu.memory_space<vmem>>, %arg3: memref<1x128xf32, #tpu.memory_space<vmem>>, %arg4: memref<8x1xi32, #tpu.memory_space<vmem>>, %arg5: memref<1x8x128xf32, #tpu.memory_space<vmem>>) attributes {dimension_semantics = [#tpu.dimension_semantics<parallel>], iteration_bounds = array<i64: 1>, scalar_prefetch = 0 : i64, scratch_operands = 0 : i64, tpu.core_type = #tpu.core_type<tc>, window_params = [{transform_indices = @transform_0, window_bounds = array<i64: 8, 32>}, {pipeline_mode = #tpu.pipeline_mode<synchronous>, transform_indices = @transform_1, window_bounds = array<i64: 128, 32>}, {pipeline_mode = #tpu.pipeline_mode<synchronous>, transform_indices = @transform_2, window_bounds = array<i64: 1, 128>}, {transform_indices = @transform_3, window_bounds = array<i64: 8, 1>}, {transform_indices = @transform_4, window_bounds = array<i64: 1, 8, 128>}]} {
    %c0 = arith.constant 0 : index
    %c0_0 = arith.constant 0 : index
    %0 = vector.load %arg1[%c0, %c0_0] : memref<8x32xf32, #tpu.memory_space<vmem>>, vector<8x32xf32>
    %c0_1 = arith.constant 0 : index
    %c0_2 = arith.constant 0 : index
    %1 = vector.load %arg2[%c0_1, %c0_2] : memref<128x32xf32, #tpu.memory_space<vmem>>, vector<128x32xf32>
    %c0_3 = arith.constant 0 : index
    %c0_4 = arith.constant 0 : index
    %2 = vector.load %arg3[%c0_3, %c0_4] : memref<1x128xf32, #tpu.memory_space<vmem>>, vector<1x128xf32>
    %c0_5 = arith.constant 0 : index
    %c0_6 = arith.constant 0 : index
    %3 = vector.load %arg4[%c0_5, %c0_6] : memref<8x1xi32, #tpu.memory_space<vmem>>, vector<8x1xi32>
    %cst = arith.constant dense<0.000000e+00> : vector<8x128xf32>
    %4 = tpu.matmul %0, %1, %cst {dimension_numbers = #tpu.dot_dimension_numbers<[1], [1], [0], [0], [0, 0, 1, 0], [], []>} : vector<8x32xf32>, vector<128x32xf32>, vector<8x128xf32> -> vector<8x128xf32>
    %5 = arith.mulf %0, %0 : vector<8x32xf32>
    %cst_7 = arith.constant dense<0.000000e+00> : vector<8xf32>
    %6 = vector.multi_reduction <add>, %5, %cst_7 [1] : vector<8x32xf32> to vector<8xf32>
    %7 = vector.shape_cast %6 : vector<8xf32> to vector<8x1xf32>
    %8 = vector.broadcast %7 : vector<8x1xf32> to vector<8x128xf32>
    %9 = vector.broadcast %2 : vector<1x128xf32> to vector<8x128xf32>
    %10 = arith.addf %8, %9 : vector<8x128xf32>
    %cst_8 = arith.constant 2.000000e+00 : f32
    %11 = vector.broadcast %cst_8 : f32 to vector<8x128xf32>
    %12 = arith.mulf %11, %4 : vector<8x128xf32>
    %13 = arith.subf %10, %12 : vector<8x128xf32>
    %cst_9 = arith.constant 0.000000e+00 : f32
    %14 = vector.broadcast %cst_9 : f32 to vector<8x128xf32>
    %15 = arith.maximumf %13, %14 : vector<8x128xf32>
    %16 = tpu.iota {dimensions = array<i32: 0>} : vector<128x128xi32>
    %17 = tpu.iota {dimensions = array<i32: 1>} : vector<128x128xi32>
    %c4_i32 = arith.constant 4 : i32
    %18 = vector.broadcast %c4_i32 : i32 to vector<128x128xi32>
    %19 = arith.muli %17, %18 : vector<128x128xi32>
    %20 = arith.cmpi sge, %16, %19 : vector<128x128xi32>
    %c4_i32_10 = arith.constant 4 : i32
    %21 = vector.broadcast %c4_i32_10 : i32 to vector<128x128xi32>
    %22 = arith.addi %19, %21 : vector<128x128xi32>
    %23 = arith.cmpi slt, %16, %22 : vector<128x128xi32>
    %24 = arith.andi %20, %23 : vector<128x128xi1>
    %25 = arith.extui %24 : vector<128x128xi1> to vector<128x128xi32>
    %26 = arith.sitofp %25 : vector<128x128xi32> to vector<128x128xf32>
    %cst_11 = arith.constant dense<0.000000e+00> : vector<8x128xf32>
    %27 = tpu.matmul %15, %26, %cst_11 {dimension_numbers = #tpu.dot_dimension_numbers<[1], [0], [0], [1], [0, 0, 1, 1], [], []>} : vector<8x128xf32>, vector<128x128xf32>, vector<8x128xf32> -> vector<8x128xf32>
    %28 = arith.mulf %15, %15 : vector<8x128xf32>
    %cst_12 = arith.constant dense<0.000000e+00> : vector<8x128xf32>
    %29 = tpu.matmul %28, %26, %cst_12 {dimension_numbers = #tpu.dot_dimension_numbers<[1], [0], [0], [1], [0, 0, 1, 1], [], []>} : vector<8x128xf32>, vector<128x128xf32>, vector<8x128xf32> -> vector<8x128xf32>
    %30 = tpu.iota {dimensions = array<i32: 1>} : vector<8x128xi32>
    %c4_i32_13 = arith.constant 4 : i32
    %31 = vector.broadcast %c4_i32_13 : i32 to vector<8x128xi32>
    %32 = arith.cmpi slt, %30, %31 : vector<8x128xi32>
    %33 = arith.extui %32 : vector<8x128xi1> to vector<8x128xi32>
    %34 = arith.sitofp %33 : vector<8x128xi32> to vector<8x128xf32>
    %c4_i32_14 = arith.constant 4 : i32
    %35 = vector.broadcast %c4_i32_14 : i32 to vector<8x128xi32>
    %36 = arith.cmpi slt, %30, %35 : vector<8x128xi32>
    %cst_15 = arith.constant 1.250000e-01 : f32
    %37 = vector.broadcast %cst_15 : f32 to vector<8x128xf32>
    %38 = arith.mulf %37, %27 : vector<8x128xf32>
    %cst_16 = arith.constant -1.000000e+30 : f32
    %39 = vector.broadcast %cst_16 : f32 to vector<8x128xf32>
    %40 = arith.select %36, %38, %39 : vector<8x128xi1>, vector<8x128xf32>
    %cst_17 = arith.constant dense<0xFF800000> : vector<8xf32>
    %41 = vector.multi_reduction <maximumf>, %40, %cst_17 [1] : vector<8x128xf32> to vector<8xf32>
    %42 = vector.shape_cast %41 : vector<8xf32> to vector<8x1xf32>
    %43 = vector.broadcast %42 : vector<8x1xf32> to vector<8x128xf32>
    %44 = arith.subf %40, %43 : vector<8x128xf32>
    %45 = math.exp %44 : vector<8x128xf32>
    %cst_18 = arith.constant dense<0.000000e+00> : vector<8xf32>
    %46 = vector.multi_reduction <add>, %45, %cst_18 [1] : vector<8x128xf32> to vector<8xf32>
    %47 = vector.shape_cast %46 : vector<8xf32> to vector<8x1xf32>
    %48 = math.log %47 : vector<8x1xf32>
    %49 = arith.addf %42, %48 : vector<8x1xf32>
    %50 = vector.broadcast %49 : vector<8x1xf32> to vector<8x128xf32>
    %51 = arith.subf %40, %50 : vector<8x128xf32>
    %c0_i32 = arith.constant 0 : i32
    %52 = vector.broadcast %c0_i32 : i32 to vector<8x1xi32>
    %53 = arith.cmpi ne, %3, %52 : vector<8x1xi32>
    %54 = arith.extui %53 : vector<8x1xi1> to vector<8x1xi32>
    %55 = arith.sitofp %54 : vector<8x1xi32> to vector<8x1xf32>
    %c1_i32 = arith.constant 1 : i32
    %56 = vector.broadcast %c1_i32 : i32 to vector<8x1xi32>
    %57 = arith.subi %3, %56 : vector<8x1xi32>
    %58 = vector.broadcast %57 : vector<8x1xi32> to vector<8x128xi32>
    %59 = arith.cmpi eq, %30, %58 : vector<8x128xi32>
    %60 = arith.extui %59 : vector<8x128xi1> to vector<8x128xi32>
    %61 = arith.sitofp %60 : vector<8x128xi32> to vector<8x128xf32>
    %62 = arith.mulf %51, %61 : vector<8x128xf32>
    %cst_19 = arith.constant dense<0.000000e+00> : vector<8xf32>
    %63 = vector.multi_reduction <add>, %62, %cst_19 [1] : vector<8x128xf32> to vector<8xf32>
    %64 = vector.shape_cast %63 : vector<8xf32> to vector<8x1xf32>
    %cst_20 = arith.constant 0.000000e+00 : f32
    %65 = vector.broadcast %cst_20 : f32 to vector<8x1xf32>
    %66 = arith.subf %65, %64 : vector<8x1xf32>
    %67 = arith.mulf %51, %34 : vector<8x128xf32>
    %cst_21 = arith.constant dense<0.000000e+00> : vector<8xf32>
    %68 = vector.multi_reduction <add>, %67, %cst_21 [1] : vector<8x128xf32> to vector<8xf32>
    %69 = vector.shape_cast %68 : vector<8xf32> to vector<8x1xf32>
    %cst_22 = arith.constant 0.000000e+00 : f32
    %70 = vector.broadcast %cst_22 : f32 to vector<8x1xf32>
    %71 = arith.subf %70, %69 : vector<8x1xf32>
    %cst_23 = arith.constant 2.500000e-01 : f32
    %72 = vector.broadcast %cst_23 : f32 to vector<8x1xf32>
    %73 = arith.mulf %71, %72 : vector<8x1xf32>
    %cst_24 = arith.constant 0.899999976 : f32
    %74 = vector.broadcast %cst_24 : f32 to vector<8x1xf32>
    %75 = arith.mulf %74, %66 : vector<8x1xf32>
    %cst_25 = arith.constant 1.000000e-01 : f32
    %76 = vector.broadcast %cst_25 : f32 to vector<8x1xf32>
    %77 = arith.mulf %76, %73 : vector<8x1xf32>
    %78 = arith.addf %75, %77 : vector<8x1xf32>
    %79 = vector.broadcast %55 : vector<8x1xf32> to vector<8x128xf32>
    %80 = arith.mulf %27, %79 : vector<8x128xf32>
    %cst_26 = arith.constant dense<0.000000e+00> : vector<128xf32>
    %81 = vector.multi_reduction <add>, %80, %cst_26 [0] : vector<8x128xf32> to vector<128xf32>
    %82 = vector.shape_cast %81 : vector<128xf32> to vector<1x128xf32>
    %83 = vector.broadcast %55 : vector<8x1xf32> to vector<8x128xf32>
    %84 = arith.mulf %29, %83 : vector<8x128xf32>
    %cst_27 = arith.constant dense<0.000000e+00> : vector<128xf32>
    %85 = vector.multi_reduction <add>, %84, %cst_27 [0] : vector<8x128xf32> to vector<128xf32>
    %86 = vector.shape_cast %85 : vector<128xf32> to vector<1x128xf32>
    %cst_28 = arith.constant dense<0.000000e+00> : vector<128xf32>
    %87 = vector.multi_reduction <add>, %61, %cst_28 [0] : vector<8x128xf32> to vector<128xf32>
    %88 = vector.shape_cast %87 : vector<128xf32> to vector<1x128xf32>
    %89 = vector.broadcast %78 : vector<8x1xf32> to vector<8x128xf32>
    %90 = arith.mulf %89, %61 : vector<8x128xf32>
    %cst_29 = arith.constant dense<0.000000e+00> : vector<128xf32>
    %91 = vector.multi_reduction <add>, %90, %cst_29 [0] : vector<8x128xf32> to vector<128xf32>
    %92 = vector.shape_cast %91 : vector<128xf32> to vector<1x128xf32>
    %93 = tpu.iota {dimensions = array<i32: 0>} : vector<8x128xi32>
    %c0_i32_30 = arith.constant 0 : i32
    %94 = vector.broadcast %c0_i32_30 : i32 to vector<8x128xi32>
    %95 = arith.cmpi eq, %93, %94 : vector<8x128xi32>
    %cst_31 = arith.constant 0.000000e+00 : f32
    %96 = vector.shape_cast %82 : vector<1x128xf32> to vector<1x128xf32>
    %97 = vector.broadcast %96 : vector<1x128xf32> to vector<8x128xf32>
    %98 = vector.broadcast %cst_31 : f32 to vector<8x128xf32>
    %99 = arith.select %95, %97, %98 : vector<8x128xi1>, vector<8x128xf32>
    %c1_i32_32 = arith.constant 1 : i32
    %100 = vector.broadcast %c1_i32_32 : i32 to vector<8x128xi32>
    %101 = arith.cmpi eq, %93, %100 : vector<8x128xi32>
    %cst_33 = arith.constant 0.000000e+00 : f32
    %102 = vector.shape_cast %86 : vector<1x128xf32> to vector<1x128xf32>
    %103 = vector.broadcast %102 : vector<1x128xf32> to vector<8x128xf32>
    %104 = vector.broadcast %cst_33 : f32 to vector<8x128xf32>
    %105 = arith.select %101, %103, %104 : vector<8x128xi1>, vector<8x128xf32>
    %106 = arith.addf %99, %105 : vector<8x128xf32>
    %c2_i32 = arith.constant 2 : i32
    %107 = vector.broadcast %c2_i32 : i32 to vector<8x128xi32>
    %108 = arith.cmpi eq, %93, %107 : vector<8x128xi32>
    %cst_34 = arith.constant 0.000000e+00 : f32
    %109 = vector.shape_cast %88 : vector<1x128xf32> to vector<1x128xf32>
    %110 = vector.broadcast %109 : vector<1x128xf32> to vector<8x128xf32>
    %111 = vector.broadcast %cst_34 : f32 to vector<8x128xf32>
    %112 = arith.select %108, %110, %111 : vector<8x128xi1>, vector<8x128xf32>
    %113 = arith.addf %106, %112 : vector<8x128xf32>
    %c3_i32 = arith.constant 3 : i32
    %114 = vector.broadcast %c3_i32 : i32 to vector<8x128xi32>
    %115 = arith.cmpi eq, %93, %114 : vector<8x128xi32>
    %cst_35 = arith.constant 0.000000e+00 : f32
    %116 = vector.shape_cast %92 : vector<1x128xf32> to vector<1x128xf32>
    %117 = vector.broadcast %116 : vector<1x128xf32> to vector<8x128xf32>
    %118 = vector.broadcast %cst_35 : f32 to vector<8x128xf32>
    %119 = arith.select %115, %117, %118 : vector<8x128xi1>, vector<8x128xf32>
    %120 = arith.addf %113, %119 : vector<8x128xf32>
    %c0_36 = arith.constant 0 : index
    %c0_37 = arith.constant 0 : index
    %c0_38 = arith.constant 0 : index
    %121 = vector.load %arg5[%c0_36, %c0_37, %c0_38] : memref<1x8x128xf32, #tpu.memory_space<vmem>>, vector<1x8x128xf32>
    %122 = vector.shape_cast %121 : vector<1x8x128xf32> to vector<8x128xf32>
    %123 = vector.shape_cast %120 : vector<8x128xf32> to vector<1x8x128xf32>
    tpu.vector_store %arg5[%c0_36, %c0_37, %c0_38], %123 {strides = array<i32>} : memref<1x8x128xf32, #tpu.memory_space<vmem>>, vector<1x8x128xf32>,
    return
  }
  func.func @transform_0(%arg0: i32) -> (i32, i32) {
    %c0_i32 = arith.constant 0 : i32
    %c0_i32_0 = arith.constant 0 : i32
    return %arg0, %c0_i32 : i32, i32
  }
  func.func @transform_1(%arg0: i32) -> (i32, i32) {
    %c0_i32 = arith.constant 0 : i32
    %c0_i32_0 = arith.constant 0 : i32
    %c0_i32_1 = arith.constant 0 : i32
    return %c0_i32, %c0_i32_0 : i32, i32
  }
  func.func @transform_2(%arg0: i32) -> (i32, i32) {
    %c0_i32 = arith.constant 0 : i32
    %c0_i32_0 = arith.constant 0 : i32
    %c0_i32_1 = arith.constant 0 : i32
    return %c0_i32, %c0_i32_0 : i32, i32
  }
  func.func @transform_3(%arg0: i32) -> (i32, i32) {
    %c0_i32 = arith.constant 0 : i32
    %c0_i32_0 = arith.constant 0 : i32
    return %arg0, %c0_i32 : i32, i32
  }
  func.func @transform_4(%arg0: i32) -> (i32, i32, i32) {
    %c0_i32 = arith.constant 0 : i32
    %c0_i32_0 = arith.constant 0 : i32
    %c0_i32_1 = arith.constant 0 : i32
    return %arg0, %c0_i32, %c0_i32_0 : i32, i32, i32
  }
}

</mosaic_0001>

<llo_original>
// kernel: rpl_loss.1
$region0: #{rpl_loss.1}
  #allocation0 [shape = 'u32[]', space=smem, size = 0x4, offset = 0x4, fixed_abs, tag = 'smem constant byte address 0x4 - core index']
  #allocation1 [shape = 'u32[144,128]{1,0:T(1,128)}', space=vmem, size = 0x12000, scoped, tag = 'internal scratch']
  %s0 = inlined_call_operand.vmem [shape: f32[8,32], index: 0, kind: input, shape index: {}]
  %s1 = inlined_call_operand.vmem [shape: f32[128,32], index: 1, kind: input, shape index: {}]
  %s2 = inlined_call_operand.vmem [shape: f32[1,128], index: 2, kind: input, shape index: {}]
  %s3 = inlined_call_operand.vmem [shape: s32[8,1], index: 3, kind: input, shape index: {}]
  %s4 = inlined_call_operand.vmem [shape: f32[1,8,128], index: 4, kind: output, shape index: {}]
  %s5 = sld [smem:[#allocation0]]
  $region26: #{rpl_loss.1} parent=0
    _
  %s7 = ssub.s32 1, %s5
  %s8 = scalar_select 0, %s7, %s5
  // Predicated region
  $region2: #{rpl_loss.1} parent=0 // pred_check
    _
  $region3: #{rpl_loss.1} parent=0 // pred_check_branch
    %10 = sbr.rel (0) target = $region5
  $region4: #{rpl_loss.1} parent=0 // pred_region
    _
  $region5: #{rpl_loss.1} parent=0 // pred_fallthru
    _
  // Predicated region
  $region6: #{rpl_loss.1} parent=0 // pred_check
    _
  $region7: #{rpl_loss.1} parent=0 // pred_check_branch
    %12 = sbr.rel (0) target = $region9
  $region8: #{rpl_loss.1} parent=0 // pred_region
    _
  $region9: #{rpl_loss.1} parent=0 // pred_fallthru
    _
  // Predicated region
  $region10: #{rpl_loss.1} parent=0 // pred_check
    _
  $region11: #{rpl_loss.1} parent=0 // pred_check_branch
    %14 = sbr.rel (0) target = $region13
  $region12: #{rpl_loss.1} parent=0 // pred_region
    _
  $region13: #{rpl_loss.1} parent=0 // pred_fallthru
    _
  // Predicated region
  $region14: #{rpl_loss.1} parent=0 // pred_check
    _
  $region15: #{rpl_loss.1} parent=0 // pred_check_branch
    %16 = sbr.rel (0) target = $region17
  $region16: #{rpl_loss.1} parent=0 // pred_region
    _
  $region17: #{rpl_loss.1} parent=0 // pred_fallthru
    _
  %v17 = vld [vmem:[%s0] sm:$0xff]
  %v18 = vld [vmem:[%s1] sm:$0xff]
  %v19 = vld [vmem:[%s1 + $0x8] sm:$0xff]
  %v20 = vld [vmem:[%s1 + $0x10] sm:$0xff]
  %v21 = vld [vmem:[%s1 + $0x18] sm:$0xff]
  %v22 = vld [vmem:[%s1 + $0x20] sm:$0xff]
  %v23 = vld [vmem:[%s1 + $0x28] sm:$0xff]
  %v24 = vld [vmem:[%s1 + $0x30] sm:$0xff]
  %v25 = vld [vmem:[%s1 + $0x38] sm:$0xff]
  %v26 = vld [vmem:[%s1 + $0x40] sm:$0xff]
  %v27 = vld [vmem:[%s1 + $0x48] sm:$0xff]
  %v28 = vld [vmem:[%s1 + $0x50] sm:$0xff]
  %v29 = vld [vmem:[%s1 + $0x58] sm:$0xff]
  %v30 = vld [vmem:[%s1 + $0x60] sm:$0xff]
  %v31 = vld [vmem:[%s1 + $0x68] sm:$0xff]
  %v32 = vld [vmem:[%s1 + $0x70] sm:$0xff]
  %v33 = vld [vmem:[%s1 + $0x78] sm:$0xff]
  %v34 = vld [vmem:[%s2] sm:$0x1]
  %v35 = vld [vmem:[%s3] sm:$0xff]
  %vm36 = vcmask 261120
  %v38 = vsel %vm36, %v17, 0
  %v41 = vsel %vm36, %v18, 0
  %v44 = vsel %vm36, %v19, 0
  %v47 = vsel %vm36, %v20, 0
  %v50 = vsel %vm36, %v21, 0
  %v53 = vsel %vm36, %v22, 0
  %v56 = vsel %vm36, %v23, 0
  %v59 = vsel %vm36, %v24, 0
  %v62 = vsel %vm36, %v25, 0
  %v65 = vsel %vm36, %v26, 0
  %v68 = vsel %vm36, %v27, 0
  %v71 = vsel %vm36, %v28, 0
  %v74 = vsel %vm36, %v29, 0
  %v77 = vsel %vm36, %v30, 0
  %v80 = vsel %vm36, %v31, 0
  %v83 = vsel %vm36, %v32, 0
  %v86 = vsel %vm36, %v33, 0
  %88 = vmatprep.subr.mxu0 0.0
  %89 = vmatpush1.xpose.msra.mxu0 %v41
  %90 = vmatprep.subr.mxu0 0.0
  %91 = vmatpush1.xpose.msra.mxu0 %v44
  %92 = vmatprep.subr.mxu0 0.0
  %93 = vmatpush1.xpose.msra.mxu0 %v47
  %94 = vmatprep.subr.mxu0 0.0
  %95 = vmatpush1.xpose.msra.mxu0 %v50
  %96 = vmatprep.subr.mxu0 0.0
  %97 = vmatpush1.xpose.msra.mxu0 %v53
  %98 = vmatprep.subr.mxu0 0.0
  %99 = vmatpush1.xpose.msra.mxu0 %v56
  %100 = vmatprep.subr.mxu0 0.0
  %101 = vmatpush1.xpose.msra.mxu0 %v59
  %102 = vmatprep.subr.mxu0 0.0
  %103 = vmatpush1.xpose.msra.mxu0 %v62
  %104 = vmatprep.subr.mxu0 0.0
  %105 = vmatpush1.xpose.msra.mxu0 %v65
  %106 = vmatprep.subr.mxu0 0.0
  %107 = vmatpush1.xpose.msra.mxu0 %v68
  %108 = vmatprep.subr.mxu0 0.0
  %109 = vmatpush1.xpose.msra.mxu0 %v71
  %110 = vmatprep.subr.mxu0 0.0
  %111 = vmatpush1.xpose.msra.mxu0 %v74
  %112 = vmatprep.subr.mxu0 0.0
  %113 = vmatpush1.xpose.msra.mxu0 %v77
  %114 = vmatprep.subr.mxu0 0.0
  %115 = vmatpush1.xpose.msra.mxu0 %v80
  %116 = vmatprep.subr.mxu0 0.0
  %117 = vmatpush1.xpose.msra.mxu0 %v83
  %118 = vmatprep.subr.mxu0 0.0
  %119 = vmatpush1.xpose.msra.mxu0 %v86
  %120 = vmatprep.subr.mxu0 0.0
  %121 = vmatpush1.xpose.msra.mxu0 0.0
  %122 = vmatprep.subr.mxu0 0.0
  %123 = vmatpush1.xpose.msra.mxu0 0.0
  %124 = vmatprep.subr.mxu0 0.0
  %125 = vmatpush1.xpose.msra.mxu0 0.0
  %126 = vmatprep.subr.mxu0 0.0
  %127 = vmatpush1.xpose.msra.mxu0 0.0
  %128 = vmatprep.subr.mxu0 0.0
  %129 = vmatpush1.xpose.msra.mxu0 0.0
  %130 = vmatprep.subr.mxu0 0.0
  %131 = vmatpush1.xpose.msra.mxu0 0.0
  %132 = vmatprep.subr.mxu0 0.0
  %133 = vmatpush1.xpose.msra.mxu0 0.0
  %134 = vmatprep.subr.mxu0 0.0
  %135 = vmatpush1.xpose.msra.mxu0 0.0
  %136 = vmatprep.subr.mxu0 0.0
  %137 = vmatpush1.xpose.msra.mxu0 0.0
  %138 = vmatprep.subr.mxu0 0.0
  %139 = vmatpush1.xpose.msra.mxu0 0.0
  %140 = vmatprep.subr.mxu0 0.0
  %141 = vmatpush1.xpose.msra.mxu0 0.0
  %142 = vmatprep.subr.mxu0 0.0
  %143 = vmatpush1.xpose.msra.mxu0 0.0
  %144 = vmatprep.subr.mxu0 0.0
  %145 = vmatpush1.xpose.msra.mxu0 0.0
  %146 = vmatprep.subr.mxu0 0.0
  %147 = vmatpush1.xpose.msra.mxu0 0.0
  %148 = vmatprep.subr.mxu0 0.0
  %149 = vmatpush1.xpose.msra.mxu0 0.0
  %150 = vmatprep.subr.mxu0 0.0
  %151 = vmatpush1.xpose.msra.mxu0 0.0
  %152 = vmatprep.mubr.f32.mxu0 0.0
  %153 = vmatmul.mubr.f32.gmra.mrb[0].mxu0 %v38
  %v154 = vpop.f32.mrb[0].mxu0
  %v155 = vadd.f32 0.0, %v154
  %v156 = vpop.f32.mrb[0].mxu0
  %157 = vdwg.mxu0
  %v158 = vmul.f32 %v17, %v17
  %v159 = vsel %vm36, %v158, 0.0
  %160 = vadd.xlane.f32.xlu0 %v159
  %v161 = vpop.xlane.xlu0 %160
  %v163 = vlaneseq
  %v164 = vshrl.u32 %v163, 7
  %v165 = vsub.s32 0, %v164
  %v166 = vrot.slane %v34, %v165
  %v168 = vadd.f32 %v161, %v166
  %v169 = vmul.f32 %v155, 2.0
  %v170 = vsub.f32 %v168, %v169
  %v171 = vmax.f32 %v170, 0.0
  %v172 = vlaneseq
  %v173 = vshrl.u32 %v172, 7
  %v174 = vadd.s32 %v173, 8
  %v175 = vadd.s32 %v173, 16
  %v176 = vadd.s32 %v173, 24
  %v177 = vadd.s32 %v173, 32
  %v178 = vadd.s32 %v173, 40
  %v179 = vadd.s32 %v173, 48
  %v180 = vadd.s32 %v173, 56
  %v181 = vadd.s32 %v173, 64
  %v182 = vadd.s32 %v173, 72
  %v183 = vadd.s32 %v173, 80
  %v184 = vadd.s32 %v173, 88
  %v185 = vadd.s32 %v173, 96
  %v186 = vadd.s32 %v173, 104
  %v187 = vadd.s32 %v173, 112
  %v188 = vadd.s32 %v173, 120
  %v189 = vlaneseq
  %v190 = vand.u32 %v189, 127
  %v191 = vmul.u32 %v190, 4
  %vm192 = vcmp.ge.s32.totalorder %v173, %v191
  %vm193 = vcmp.ge.s32.totalorder %v174, %v191
  %vm194 = vcmp.ge.s32.totalorder %v175, %v191
  %vm195 = vcmp.ge.s32.totalorder %v176, %v191
  %vm196 = vcmp.ge.s32.totalorder %v177, %v191
  %vm197 = vcmp.ge.s32.totalorder %v178, %v191
  %vm198 = vcmp.ge.s32.totalorder %v179, %v191
  %vm199 = vcmp.ge.s32.totalorder %v180, %v191
  %vm200 = vcmp.ge.s32.totalorder %v181, %v191
  %vm201 = vcmp.ge.s32.totalorder %v182, %v191
  %vm202 = vcmp.ge.s32.totalorder %v183, %v191
  %vm203 = vcmp.ge.s32.totalorder %v184, %v191
  %vm204 = vcmp.ge.s32.totalorder %v185, %v191
  %vm205 = vcmp.ge.s32.totalorder %v186, %v191
  %vm206 = vcmp.ge.s32.totalorder %v187, %v191
  %vm207 = vcmp.ge.s32.totalorder %v188, %v191
  %v208 = vadd.s32 %v191, 4
  %vm209 = vcmp.lt.s32.totalorder %v173, %v208
  %vm210 = vcmp.lt.s32.totalorder %v174, %v208
  %vm211 = vcmp.lt.s32.totalorder %v175, %v208
  %vm212 = vcmp.lt.s32.totalorder %v176, %v208
  %vm213 = vcmp.lt.s32.totalorder %v177, %v208
  %vm214 = vcmp.lt.s32.totalorder %v178, %v208
  %vm215 = vcmp.lt.s32.totalorder %v179, %v208
  %vm216 = vcmp.lt.s32.totalorder %v180, %v208
  %vm217 = vcmp.lt.s32.totalorder %v181, %v208
  %vm218 = vcmp.lt.s32.totalorder %v182, %v208
  %vm219 = vcmp.lt.s32.totalorder %v183, %v208
  %vm220 = vcmp.lt.s32.totalorder %v184, %v208
  %vm221 = vcmp.lt.s32.totalorder %v185, %v208
  %vm222 = vcmp.lt.s32.totalorder %v186, %v208
  %vm223 = vcmp.lt.s32.totalorder %v187, %v208
  %vm224 = vcmp.lt.s32.totalorder %v188, %v208
  %vm225 = vmand %vm192, %vm209
  %vm226 = vmand %vm193, %vm210
  %vm227 = vmand %vm194, %vm211
  %vm228 = vmand %vm195, %vm212
  %vm229 = vmand %vm196, %vm213
  %vm230 = vmand %vm197, %vm214
  %vm231 = vmand %vm198, %vm215
  %vm232 = vmand %vm199, %vm216
  %vm233 = vmand %vm200, %vm217
  %vm234 = vmand %vm201, %vm218
  %vm235 = vmand %vm202, %vm219
  %vm236 = vmand %vm203, %vm220
  %vm237 = vmand %vm204, %vm221
  %vm238 = vmand %vm205, %vm222
  %vm239 = vmand %vm206, %vm223
  %vm240 = vmand %vm207, %vm224
  %v241 = vsel %vm225, 1, 0
  %v242 = vsel %vm226, 1, 0
  %v243 = vsel %vm227, 1, 0
  %v244 = vsel %vm228, 1, 0
  %v245 = vsel %vm229, 1, 0
  %v246 = vsel %vm230, 1, 0
  %v247 = vsel %vm231, 1, 0
  %v248 = vsel %vm232, 1, 0
  %v249 = vsel %vm233, 1, 0
  %v250 = vsel %vm234, 1, 0
  %v251 = vsel %vm235, 1, 0
  %v252 = vsel %vm236, 1, 0
  %v253 = vsel %vm237, 1, 0
  %v254 = vsel %vm238, 1, 0
  %v255 = vsel %vm239, 1, 0
  %v256 = vsel %vm240, 1, 0
  %v257 = vcvt.s32.f32 %v241
  %v258 = vcvt.s32.f32 %v242
  %v259 = vcvt.s32.f32 %v243
  %v260 = vcvt.s32.f32 %v244
  %v261 = vcvt.s32.f32 %v245
  %v262 = vcvt.s32.f32 %v246
  %v263 = vcvt.s32.f32 %v247
  %v264 = vcvt.s32.f32 %v248
  %v265 = vcvt.s32.f32 %v249
  %v266 = vcvt.s32.f32 %v250
  %v267 = vcvt.s32.f32 %v251
  %v268 = vcvt.s32.f32 %v252
  %v269 = vcvt.s32.f32 %v253
  %v270 = vcvt.s32.f32 %v254
  %v271 = vcvt.s32.f32 %v255
  %v272 = vcvt.s32.f32 %v256
  %273 = vmatprep.subr.mxu0 0.0
  %274 = vmatpush1.msra.mxu0 %v257
  %275 = vmatprep.subr.mxu0 0.0
  %276 = vmatpush1.msra.mxu0 %v258
  %277 = vmatprep.subr.mxu0 0.0
  %278 = vmatpush1.msra.mxu0 %v259
  %279 = vmatprep.subr.mxu0 0.0
  %280 = vmatpush1.msra.mxu0 %v260
  %281 = vmatprep.subr.mxu0 0.0
  %282 = vmatpush1.msra.mxu0 %v261
  %283 = vmatprep.subr.mxu0 0.0
  %284 = vmatpush1.msra.mxu0 %v262
  %285 = vmatprep.subr.mxu0 0.0
  %286 = vmatpush1.msra.mxu0 %v263
  %287 = vmatprep.subr.mxu0 0.0
  %288 = vmatpush1.msra.mxu0 %v264
  %289 = vmatprep.subr.mxu0 0.0
  %290 = vmatpush1.msra.mxu0 %v265
  %291 = vmatprep.subr.mxu0 0.0
  %292 = vmatpush1.msra.mxu0 %v266
  %293 = vmatprep.subr.mxu0 0.0
  %294 = vmatpush1.msra.mxu0 %v267
  %295 = vmatprep.subr.mxu0 0.0
  %296 = vmatpush1.msra.mxu0 %v268
  %297 = vmatprep.subr.mxu0 0.0
  %298 = vmatpush1.msra.mxu0 %v269
  %299 = vmatprep.subr.mxu0 0.0
  %300 = vmatpush1.msra.mxu0 %v270
  %301 = vmatprep.subr.mxu0 0.0
  %302 = vmatpush1.msra.mxu0 %v271
  %303 = vmatprep.subr.mxu0 0.0
  %304 = vmatpush1.msra.mxu0 %v272
  %305 = vmatprep.subr.mxu0 0.0
  %306 = vmatpush1.msra.mxu0 0.0
  %307 = vmatprep.subr.mxu0 0.0
  %308 = vmatpush1.msra.mxu0 0.0
  %309 = vmatprep.subr.mxu0 0.0
  %310 = vmatpush1.msra.mxu0 0.0
  %311 = vmatprep.subr.mxu0 0.0
  %312 = vmatpush1.msra.mxu0 0.0
  %313 = vmatprep.subr.mxu0 0.0
  %314 = vmatpush1.msra.mxu0 0.0
  %315 = vmatprep.subr.mxu0 0.0
  %316 = vmatpush1.msra.mxu0 0.0
  %317 = vmatprep.subr.mxu0 0.0
  %318 = vmatpush1.msra.mxu0 0.0
  %319 = vmatprep.subr.mxu0 0.0
  %320 = vmatpush1.msra.mxu0 0.0
  %321 = vmatprep.subr.mxu0 0.0
  %322 = vmatpush1.msra.mxu0 0.0
  %323 = vmatprep.subr.mxu0 0.0
  %324 = vmatpush1.msra.mxu0 0.0
  %325 = vmatprep.subr.mxu0 0.0
  %326 = vmatpush1.msra.mxu0 0.0
  %327 = vmatprep.subr.mxu0 0.0
  %328 = vmatpush1.msra.mxu0 0.0
  %329 = vmatprep.subr.mxu0 0.0
  %330 = vmatpush1.msra.mxu0 0.0
  %331 = vmatprep.subr.mxu0 0.0
  %332 = vmatpush1.msra.mxu0 0.0
  %333 = vmatprep.subr.mxu0 0.0
  %334 = vmatpush1.msra.mxu0 0.0
  %335 = vmatprep.subr.mxu0 0.0
  %336 = vmatpush1.msra.mxu0 0.0
  %337 = vmatprep.mubr.f32.mxu0 0.0
  %338 = vmatmul.mubr.f32.gmra.mrb[0].mxu0 %v171
  %v339 = vpop.f32.mrb[0].mxu0
  %v340 = vadd.f32 0.0, %v339
  %v341 = vpop.f32.mrb[0].mxu0
  %342 = vdwg.mxu0
  %v343 = vmul.f32 %v171, %v171
  %344 = vmatprep.subr.mxu0 0.0
  %345 = vmatpush1.msra.mxu0 %v257
  %346 = vmatprep.subr.mxu0 0.0
  %347 = vmatpush1.msra.mxu0 %v258
  %348 = vmatprep.subr.mxu0 0.0
  %349 = vmatpush1.msra.mxu0 %v259
  %350 = vmatprep.subr.mxu0 0.0
  %351 = vmatpush1.msra.mxu0 %v260
  %352 = vmatprep.subr.mxu0 0.0
  %353 = vmatpush1.msra.mxu0 %v261
  %354 = vmatprep.subr.mxu0 0.0
  %355 = vmatpush1.msra.mxu0 %v262
  %356 = vmatprep.subr.mxu0 0.0
  %357 = vmatpush1.msra.mxu0 %v263
  %358 = vmatprep.subr.mxu0 0.0
  %359 = vmatpush1.msra.mxu0 %v264
  %360 = vmatprep.subr.mxu0 0.0
  %361 = vmatpush1.msra.mxu0 %v265
  %362 = vmatprep.subr.mxu0 0.0
  %363 = vmatpush1.msra.mxu0 %v266
  %364 = vmatprep.subr.mxu0 0.0
  %365 = vmatpush1.msra.mxu0 %v267
  %366 = vmatprep.subr.mxu0 0.0
  %367 = vmatpush1.msra.mxu0 %v268
  %368 = vmatprep.subr.mxu0 0.0
  %369 = vmatpush1.msra.mxu0 %v269
  %370 = vmatprep.subr.mxu0 0.0
  %371 = vmatpush1.msra.mxu0 %v270
  %372 = vmatprep.subr.mxu0 0.0
  %373 = vmatpush1.msra.mxu0 %v271
  %374 = vmatprep.subr.mxu0 0.0
  %375 = vmatpush1.msra.mxu0 %v272
  %376 = vmatprep.subr.mxu0 0.0
  %377 = vmatpush1.msra.mxu0 0.0
  %378 = vmatprep.subr.mxu0 0.0
  %379 = vmatpush1.msra.mxu0 0.0
  %380 = vmatprep.subr.mxu0 0.0
  %381 = vmatpush1.msra.mxu0 0.0
  %382 = vmatprep.subr.mxu0 0.0
  %383 = vmatpush1.msra.mxu0 0.0
  %384 = vmatprep.subr.mxu0 0.0
  %385 = vmatpush1.msra.mxu0 0.0
  %386 = vmatprep.subr.mxu0 0.0
  %387 = vmatpush1.msra.mxu0 0.0
  %388 = vmatprep.subr.mxu0 0.0
  %389 = vmatpush1.msra.mxu0 0.0
  %390 = vmatprep.subr.mxu0 0.0
  %391 = vmatpush1.msra.mxu0 0.0
  %392 = vmatprep.subr.mxu0 0.0
  %393 = vmatpush1.msra.mxu0 0.0
  %394 = vmatprep.subr.mxu0 0.0
  %395 = vmatpush1.msra.mxu0 0.0
  %396 = vmatprep.subr.mxu0 0.0
  %397 = vmatpush1.msra.mxu0 0.0
  %398 = vmatprep.subr.mxu0 0.0
  %399 = vmatpush1.msra.mxu0 0.0
  %400 = vmatprep.subr.mxu0 0.0
  %401 = vmatpush1.msra.mxu0 0.0
  %402 = vmatprep.subr.mxu0 0.0
  %403 = vmatpush1.msra.mxu0 0.0
  %404 = vmatprep.subr.mxu0 0.0
  %405 = vmatpush1.msra.mxu0 0.0
  %406 = vmatprep.subr.mxu0 0.0
  %407 = vmatpush1.msra.mxu0 0.0
  %408 = vmatprep.mubr.f32.mxu0 0.0
  %409 = vmatmul.mubr.f32.gmra.mrb[0].mxu0 %v343
  %v410 = vpop.f32.mrb[0].mxu0
  %v411 = vadd.f32 0.0, %v410
  %v412 = vpop.f32.mrb[0].mxu0
  %413 = vdwg.mxu0
  %vm414 = vcmp.lt.s32.totalorder %v190, 4
  %v415 = vsel %vm414, 1, 0
  %v416 = vcvt.s32.f32 %v415
  %v417 = vmul.f32 %v340, 0.125
  %v418 = vsel %vm414, %v417, -1e+30
  %419 = vmax.xlane.f32.xlu0 %v418
  %v420 = vpop.xlane.xlu0 %419
  %v421 = vsub.f32 %v418, %v420
  %v422 = vmul.f32 %v421, 1.442695
  %v423 = vpow.pop %v422
  %424 = vadd.xlane.f32.xlu0 %v423
  %v425 = vpop.xlane.xlu0 %424
  %v426 = vlog2.pop %v425
  %v427 = vmul.f32 %v426, 0.6931472
  %v428 = vadd.f32 %v420, %v427
  %v429 = vsub.f32 %v418, %v428
  %vm430 = vcmp.ne.s32.totalorder %v35, 0
  %v431 = vsel %vm430, 1, 0
  %v432 = vcvt.s32.f32 %v431
  %v433 = vsub.s32 %v35, 1
  %434 = vset.pattern.permute.xlu0 0
  %435 = vperm.xlu0 %434, %v433
  %v436 = vpop.permute.xlu0 %435
  %vm437 = vcmp.eq.s32.totalorder %v190, %v436
  %v438 = vsel %vm437, 1, 0
  %v439 = vcvt.s32.f32 %v438
  %v440 = vmul.f32 %v429, %v439
  %441 = vadd.xlane.f32.xlu0 %v440
  %v442 = vpop.xlane.xlu0 %441
  %v443 = vsub.f32 0.0, %v442
  %v444 = vmul.f32 %v429, %v416
  %445 = vadd.xlane.f32.xlu0 %v444
  %v446 = vpop.xlane.xlu0 %445
  %v447 = vsub.f32 0.0, %v446
  %v448 = vmul.f32 %v447, 0.25
  %v449 = vmul.f32 %v443, 0.9
  %v450 = vmul.f32 %v448, 0.1
  %v451 = vadd.f32 %v449, %v450
  %453 = vset.pattern.permute.xlu0 0
  %454 = vperm.xlu0 %453, %v432
  %v455 = vpop.permute.xlu0 %454
  %v457 = vmul.f32 %v340, %v455
  %v458 = vrot.slane %v457, 4
  %v459 = vadd.f32 %v457, %v458
  %v460 = vrot.slane %v459, 2
  %v461 = vadd.f32 %v459, %v460
  %v462 = vrot.slane %v461, 1
  %v463 = vadd.f32 %v461, %v462
  %v464 = vmul.f32 %v411, %v455
  %v465 = vrot.slane %v464, 4
  %v466 = vadd.f32 %v464, %v465
  %v467 = vrot.slane %v466, 2
  %v468 = vadd.f32 %v466, %v467
  %v469 = vrot.slane %v468, 1
  %v470 = vadd.f32 %v468, %v469
  %v471 = vrot.slane %v439, 4
  %v472 = vadd.f32 %v439, %v471
  %v473 = vrot.slane %v472, 2
  %v474 = vadd.f32 %v472, %v473
  %v475 = vrot.slane %v474, 1
  %v476 = vadd.f32 %v474, %v475
  %v477 = vmul.f32 %v451, %v439
  %v478 = vrot.slane %v477, 4
  %v479 = vadd.f32 %v477, %v478
  %v480 = vrot.slane %v479, 2
  %v481 = vadd.f32 %v479, %v480
  %v482 = vrot.slane %v481, 1
  %v483 = vadd.f32 %v481, %v482
  %vm484 = vcmp.eq.s32.totalorder %v173, 0
  %v485 = vsel %vm484, %v463, 0.0
  %vm486 = vcmp.eq.s32.totalorder %v173, 1
  %v487 = vsel %vm486, %v470, 0.0
  %v488 = vadd.f32 %v485, %v487
  %vm489 = vcmp.eq.s32.totalorder %v173, 2
  %v490 = vsel %vm489, %v476, 0.0
  %v491 = vadd.f32 %v488, %v490
  %vm492 = vcmp.eq.s32.totalorder %v173, 3
  %v493 = vsel %vm492, %v483, 0.0
  %v494 = vadd.f32 %v491, %v493
  %495 = vst [vmem:[%s4] sm:$0xff] %v494
  // Predicated region
  $region18: #{rpl_loss.1} parent=0 // pred_check
    _
  $region19: #{rpl_loss.1} parent=0 // pred_check_branch
    %497 = sbr.rel (0) target = $region21
  $region20: #{rpl_loss.1} parent=0 // pred_region
    _
  $region21: #{rpl_loss.1} parent=0 // pred_fallthru
    _
  // Predicated region
  $region22: #{rpl_loss.1} parent=0 // pred_check
    _
  $region23: #{rpl_loss.1} parent=0 // pred_check_branch
    %499 = sbr.rel (0) target = $region25
  $region24: #{rpl_loss.1} parent=0 // pred_region
    _
  $region25: #{rpl_loss.1} parent=0 // pred_fallthru
    _

</llo_original>
